<compile_context>
chip_gen: v7x
topology: tpu7x:2x2x1
jax: 0.10.0
libtpu: 0.0.40
codegen_flags: <defaults>
</compile_context>

<pallas_src>
import math

import jax
import jax.numpy as jnp
from jax import lax
from jax.experimental import pallas as pl
from jax.experimental.pallas import tpu as pltpu


def _round_up(x, m):
    return (x + m - 1) // m * m


# ---------------- Pallas kernels ----------------

def _make_conv_stats_kernel(k_taps, rows_per_tap, v_step, lane_tile, l_out):
    """Conv tile as ONE deep matmul (contraction K*C_in) + fused per-sample stats.

    Refs:
      x_ref : (1, 1, cin_blk, win)   lane window (with temporal halo) for (n, j)
      w_ref : (C_out, K*cin_p)
      y_ref : (1, C_out, lane_tile)  conv output tile (lane-dense)
      s_ref : (1, C_out, 2)          per-sample running [sum, sum^2] (resident over j)
      xs_ref: (K*cin_p, lane_tile)   VMEM scratch: stacked-tap operand (k_taps > 1 only)
    """

    def body(x_ref, w_ref, y_ref, s_ref, xs_ref):
        j = pl.program_id(1)

        @pl.when(j == 0)
        def _init():
            s_ref[...] = jnp.zeros_like(s_ref)

        if k_taps == 1:
            operand = x_ref[0, 0]                       # (cin_blk, lane_tile)
        else:
            # Build the stacked operand: tap k is a *static* lane offset k*V of the
            # halo window (no dynamic lane slicing, no per-tap matmul).
            for k in range(k_taps):
                xs_ref[k * rows_per_tap:(k + 1) * rows_per_tap, :] = (
                    x_ref[0, 0, :, k * v_step:k * v_step + lane_tile])
            operand = xs_ref[...]

        acc = jnp.dot(w_ref[...], operand, preferred_element_type=jnp.float32)
        y_ref[0] = acc.astype(y_ref.dtype)

        # Mask lanes beyond L_out (last partial tile) out of the statistics.
        col = lax.broadcasted_iota(jnp.int32, (1, lane_tile), 1) + j * lane_tile
        accm = jnp.where(col < l_out, acc, 0.0)
        s_ref[0, :, 0:1] += jnp.sum(accm, axis=1, keepdims=True)
        s_ref[0, :, 1:2] += jnp.sum(accm * accm, axis=1, keepdims=True)

    if k_taps == 1:
        def kernel(x_ref, w_ref, y_ref, s_ref):
            body(x_ref, w_ref, y_ref, s_ref, None)
        return kernel
    return body


def _bn_relu_kernel(y_ref, scale_ref, shift_ref, o_ref):
    # y_ref: (1, C_out, lane_tile); scale/shift: (C_out, 1) broadcast along lanes.
    z = y_ref[0] * scale_ref[...] + shift_ref[...]
    o_ref[0] = jnp.maximum(z, 0.0).astype(o_ref.dtype)


# ---------------- wrapper ----------------

def unit2d_forward(x_nchw, weight, bias, gamma, beta,
                   kernel_size, stride=1, eps=1e-5, lane_tile=512,
                   compute_dtype=jnp.bfloat16):
    """Forward pass of Unit2D (dim=2), training-mode BatchNorm.

    x_nchw : (N, C_in, T, V) f32; weight : (C_out, C_in, K, 1); bias : (C_out,)
    gamma, beta : (C_out,) BatchNorm affine parameters.
    """
    del bias  # (conv+b) - mean(conv+b) == conv - mean(conv): exact cancellation.
    # TODO(synk): if eval-mode BN (running statistics) is ever needed, re-add the bias.

    N, C_in, T, V = x_nchw.shape
    C_out = weight.shape[0]
    K = int(kernel_size)
    pad = (K - 1) // 2
    T_out = (T + 2 * pad - K) // stride + 1
    L_out = T_out * V

    cb = jnp.dtype(compute_dtype).itemsize
    sub = 16 if cb == 2 else 8
    cin_p = _round_up(C_in, sub)            # sublane-aligned contraction rows per tap

    # ---- lane tile: keep the f32 accumulator within the vreg budget, then clamp ----
    vreg_cap = max(128, ((128 * 1024) // (4 * C_out)) // 128 * 128)
    lane_tile = int(min(int(lane_tile), vreg_cap))
    if L_out <= lane_tile:
        lane_tile = L_out                    # single full-width tile
    else:
        lane_tile = max(128, (lane_tile // 128) * 128)
    n_tiles = -(-L_out // lane_tile)

    w_k = jnp.pad(weight[:, :, :, 0], ((0, 0), (0, cin_p - C_in), (0, 0)))  # (C_out, cin_p, K)
    w2d = jnp.transpose(w_k, (0, 2, 1)).reshape(C_out, K * cin_p).astype(compute_dtype)
    cdim = K * cin_p                         # contraction depth of the single matmul

    if stride == 1:
        # Taps are pure lane shifts of +k*V; only the (K-1)*V halo is duplicated.
        k_taps, v_step = K, V
        halo = (K - 1) * V
        win = lane_tile + halo
        lp = n_tiles * lane_tile + halo
        x_flat = x_nchw.reshape(N, C_in, T * V)
        x_pad = jnp.pad(
            x_flat,
            ((0, 0), (0, cin_p - C_in), (pad * V, lp - pad * V - T * V)),
        ).astype(compute_dtype)
        cin_blk = cin_p
    else:
        # Strided conv: taps are not lane shifts -> stack them in glue (K x input traffic).
        k_taps, v_step = 1, V
        win = lane_tile
        xp = jnp.pad(x_nchw, ((0, 0), (0, cin_p - C_in), (pad, pad), (0, 0)))
        taps = [xp[:, :, k:k + T_out * stride:stride, :] for k in range(K)]
        x_st = jnp.concatenate(taps, axis=1).reshape(N, K * cin_p, L_out)
        lp = n_tiles * lane_tile
        x_pad = jnp.pad(x_st, ((0, 0), (0, 0), (0, lp - L_out))).astype(compute_dtype)
        cin_blk = K * cin_p

    # Overlapping lane windows (fused with the pad/cast pass by XLA): all in-kernel
    # slicing becomes static and x streams tile-by-tile through the pipeline.
    # TODO(synk): in-kernel halo carry across j would avoid the halo duplication.
    x_win = jnp.stack([x_pad[:, :, j * lane_tile:j * lane_tile + win]
                       for j in range(n_tiles)], axis=1)   # (N, n_tiles, cin_blk, win)

    # ---- VMEM budget: derived from actual block sizes, clamped to device capacity ----
    try:
        phys = int(pltpu.get_tpu_info().vmem_capacity_bytes)
    except Exception:
        phys = 64 << 20                       # v7x: smallest per-TensorCore VMEM
    vmem_cap = max(32 << 20, int(phys * 0.8))
    est = (2 * cin_blk * win * cb             # x windows (double-buffered)
           + 2 * C_out * cdim * cb            # weights
           + 2 * C_out * lane_tile * 4        # y tiles
           + 2 * C_out * 2 * 4                # stats
           + (cdim * lane_tile * cb if k_taps > 1 else 0)   # stacked-operand scratch
           + 4 * C_out * lane_tile * 4)       # kernel-2 y in/out tiles
    vmem_limit = int(min(max(2 * est + (8 << 20), 32 << 20), vmem_cap))

    conv_kernel = _make_conv_stats_kernel(k_taps, cin_p, v_step, lane_tile, L_out)
    scratch = [pltpu.VMEM((cdim, lane_tile), compute_dtype)] if k_taps > 1 else []
    grid = (N, n_tiles)

    conv_cost = pl.CostEstimate(
        flops=2 * N * L_out * cdim * C_out,
        transcendentals=0,
        bytes_accessed=int(x_win.size * cb + w2d.size * cb
                           + N * C_out * L_out * 4 + N * C_out * 2 * 4))

    # ---- Pallas kernel 1: conv (single deep matmul per tile) + fused BN partial stats ----
    y, stats = pl.pallas_call(
        conv_kernel,
        out_shape=(
            jax.ShapeDtypeStruct((N, C_out, L_out), jnp.float32),
            jax.ShapeDtypeStruct((N, C_out, 2), jnp.float32),
        ),
        grid_spec=pltpu.PrefetchScalarGridSpec(
            num_scalar_prefetch=0,
            grid=grid,
            in_specs=[
                pl.BlockSpec((1, 1, cin_blk, win), lambda n, j: (n, j, 0, 0)),
                pl.BlockSpec((C_out, cdim), lambda n, j: (0, 0)),
            ],
            out_specs=[
                pl.BlockSpec((1, C_out, lane_tile), lambda n, j: (n, 0, j)),
                pl.BlockSpec((1, C_out, 2), lambda n, j: (n, 0, 0)),
            ],
            scratch_shapes=scratch,
        ),
        compiler_params=pltpu.CompilerParams(
            dimension_semantics=("parallel", "arbitrary"),
            vmem_limit_bytes=vmem_limit),
        cost_estimate=conv_cost,
    )(x_win, w2d)

    # ---- BN batch statistics: tiny (N, C_out, 2) reduction in JAX glue ----
    M = N * L_out
    sums = jnp.sum(stats, axis=0)                       # (C_out, 2)
    mean = sums[:, 0] / M
    var = jnp.maximum(sums[:, 1] / M - mean * mean, 0.0)  # biased variance
    # TODO(synk): single-pass E[x^2]-mean^2 can lose precision vs two-pass at extreme scales.
    inv = gamma.astype(jnp.float32) / jnp.sqrt(var + eps)
    scale = inv.reshape(C_out, 1)
    shift = (beta.astype(jnp.float32) - mean * inv).reshape(C_out, 1)

    bn_cost = pl.CostEstimate(
        flops=2 * N * C_out * L_out,
        transcendentals=0,
        bytes_accessed=int(2 * N * C_out * L_out * 4 + 2 * C_out * 4))

    # ---- Pallas kernel 2: BN affine + ReLU, overwriting y in place ----
    out_flat = pl.pallas_call(
        _bn_relu_kernel,
        out_shape=jax.ShapeDtypeStruct((N, C_out, L_out), jnp.float32),
        grid_spec=pltpu.PrefetchScalarGridSpec(
            num_scalar_prefetch=0,
            grid=grid,
            in_specs=[
                pl.BlockSpec((1, C_out, lane_tile), lambda n, j: (n, 0, j)),
                pl.BlockSpec((C_out, 1), lambda n, j: (0, 0)),
                pl.BlockSpec((C_out, 1), lambda n, j: (0, 0)),
            ],
            out_specs=pl.BlockSpec((1, C_out, lane_tile), lambda n, j: (n, 0, j)),
        ),
        compiler_params=pltpu.CompilerParams(
            dimension_semantics=("parallel", "parallel"),
            vmem_limit_bytes=vmem_limit),
        cost_estimate=bn_cost,
        input_output_aliases={0: 0},
    )(y, scale, shift)

    # (N, C_out, T_out*V) -> NCHW is a pure reshape: no transpose pass.
    return out_flat.reshape(N, C_out, T_out, V)


# ---------------- reference (pure JAX) for sanity ----------------

def unit2d_reference(x_nchw, weight, bias, gamma, beta, kernel_size, stride=1, eps=1e-5):
    pad = (kernel_size - 1) // 2
    y = lax.conv_general_dilated(
        x_nchw, weight, window_strides=(stride, 1),
        padding=((pad, pad), (0, 0)),
        dimension_numbers=("NCHW", "OIHW", "NCHW"),
        precision=lax.Precision.HIGHEST)
    y = y + bias.reshape(1, -1, 1, 1)
    mean = jnp.mean(y, axis=(0, 2, 3), keepdims=True)
    var = jnp.mean((y - mean) ** 2, axis=(0, 2, 3), keepdims=True)
    yn = (y - mean) / jnp.sqrt(var + eps)
    yn = yn * gamma.reshape(1, -1, 1, 1) + beta.reshape(1, -1, 1, 1)
    return jnp.maximum(yn, 0.0)


if __name__ == "__main__":
    # Unit2D(D_in=4, D_out=8, kernel_size=3, dim=2, dropout=0, bias=True)
    D_in, D_out, K = 4, 8, 3
    N, T, V = 2, 16, 16

    key = jax.random.PRNGKey(0)
    kx, kw, kb = jax.random.split(key, 3)

    x = jax.random.normal(kx, (N, D_in, T, V), dtype=jnp.float32)
    n_fan = D_out * K * 1                     # conv_init: weight ~ N(0, sqrt(2/n))
    weight = jax.random.normal(kw, (D_out, D_in, K, 1), dtype=jnp.float32) * math.sqrt(2.0 / n_fan)
    bias = jax.random.normal(kb, (D_out,), dtype=jnp.float32) * 0.1
    gamma = jnp.ones((D_out,), dtype=jnp.float32)   # BatchNorm2d default init
    beta = jnp.zeros((D_out,), dtype=jnp.float32)

    fwd = jax.jit(unit2d_forward,
                  static_argnames=("kernel_size", "stride", "lane_tile", "compute_dtype"))

    # Reference uses the same bf16-rounded conv operands as the kernel's MXU path.
    x_r = x.astype(jnp.bfloat16).astype(jnp.float32)
    w_r = weight.astype(jnp.bfloat16).astype(jnp.float32)

    for stride in (1, 2):
        pad = (K - 1) // 2
        t_out = (T + 2 * pad - K) // stride + 1
        out = fwd(x, weight, bias, gamma, beta,
                  kernel_size=K, stride=stride, lane_tile=128)
        out = jax.block_until_ready(out)
        assert out.shape == (N, D_out, t_out, V), (stride, out.shape)
        ref = unit2d_reference(x_r, w_r, bias, gamma, beta, K, stride)
        err = float(jnp.max(jnp.abs(out - ref)))
        assert err < 2e-3, (stride, err)

    print("KERNEL_OK")
</pallas_src>

<mosaic_0001>
module attributes {stable_mosaic.version = 11 : i64} {
  func.func @body(%arg0: i32, %arg1: i32, %arg2: memref<1x1x16x160xbf16, #tpu.memory_space<vmem>>, %arg3: memref<8x48xbf16, #tpu.memory_space<vmem>>, %arg4: memref<1x8x128xf32, #tpu.memory_space<vmem>>, %arg5: memref<1x8x2xf32, #tpu.memory_space<vmem>>, %arg6: memref<48x128xbf16, #tpu.memory_space<vmem>>) attributes {dimension_semantics = [#tpu.dimension_semantics<parallel>, #tpu.dimension_semantics<arbitrary>], iteration_bounds = array<i64: 2, 2>, scalar_prefetch = 0 : i64, scratch_operands = 1 : i64, tpu.core_type = #tpu.core_type<tc>, window_params = [{transform_indices = @transform_0, window_bounds = array<i64: 1, 1, 16, 160>}, {pipeline_mode = #tpu.pipeline_mode<synchronous>, transform_indices = @transform_1, window_bounds = array<i64: 8, 48>}, {transform_indices = @transform_2, window_bounds = array<i64: 1, 8, 128>}, {transform_indices = @transform_3, window_bounds = array<i64: 1, 8, 2>}]} {
    %c0_i32 = arith.constant 0 : i32
    %0 = arith.cmpi eq, %arg1, %c0_i32 : i32
    %1 = arith.extui %0 : i1 to i32
    %c0_i32_0 = arith.constant 0 : i32
    %2 = arith.cmpi ne, %1, %c0_i32_0 : i32
    scf.if %2 {
      %cst_37 = arith.constant 0.000000e+00 : f32
      %45 = vector.broadcast %cst_37 : f32 to vector<1x8x2xf32>
      %c0_38 = arith.constant 0 : index
      %c0_39 = arith.constant 0 : index
      %c0_40 = arith.constant 0 : index
      %46 = vector.load %arg5[%c0_38, %c0_39, %c0_40] : memref<1x8x2xf32, #tpu.memory_space<vmem>>, vector<1x8x2xf32>
      tpu.vector_store %arg5[%c0_38, %c0_39, %c0_40], %45 {strides = array<i32>} : memref<1x8x2xf32, #tpu.memory_space<vmem>>, vector<1x8x2xf32>,
    } else {
    }
    %c0 = arith.constant 0 : index
    %c0_1 = arith.constant 0 : index
    %c0_2 = arith.constant 0 : index
    %c0_3 = arith.constant 0 : index
    %3 = vector.load %arg2[%c0, %c0_1, %c0_2, %c0_3] : memref<1x1x16x160xbf16, #tpu.memory_space<vmem>>, vector<1x1x16x128xbf16>
    %4 = vector.shape_cast %3 : vector<1x1x16x128xbf16> to vector<16x128xbf16>
    %c0_4 = arith.constant 0 : index
    %c0_5 = arith.constant 0 : index
    %5 = vector.load %arg6[%c0_4, %c0_5] : memref<48x128xbf16, #tpu.memory_space<vmem>>, vector<16x128xbf16>
    tpu.vector_store %arg6[%c0_4, %c0_5], %4 {strides = array<i32>} : memref<48x128xbf16, #tpu.memory_space<vmem>>, vector<16x128xbf16>,
    %c0_6 = arith.constant 0 : index
    %c0_7 = arith.constant 0 : index
    %c0_8 = arith.constant 0 : index
    %c16 = arith.constant 16 : index
    %6 = vector.load %arg2[%c0_6, %c0_7, %c0_8, %c16] : memref<1x1x16x160xbf16, #tpu.memory_space<vmem>>, vector<1x1x16x128xbf16>
    %7 = vector.shape_cast %6 : vector<1x1x16x128xbf16> to vector<16x128xbf16>
    %c16_9 = arith.constant 16 : index
    %c0_10 = arith.constant 0 : index
    %8 = vector.load %arg6[%c16_9, %c0_10] : memref<48x128xbf16, #tpu.memory_space<vmem>>, vector<16x128xbf16>
    tpu.vector_store %arg6[%c16_9, %c0_10], %7 {strides = array<i32>} : memref<48x128xbf16, #tpu.memory_space<vmem>>, vector<16x128xbf16>,
    %c0_11 = arith.constant 0 : index
    %c0_12 = arith.constant 0 : index
    %c0_13 = arith.constant 0 : index
    %c32 = arith.constant 32 : index
    %9 = vector.load %arg2[%c0_11, %c0_12, %c0_13, %c32] : memref<1x1x16x160xbf16, #tpu.memory_space<vmem>>, vector<1x1x16x128xbf16>
    %10 = vector.shape_cast %9 : vector<1x1x16x128xbf16> to vector<16x128xbf16>
    %c32_14 = arith.constant 32 : index
    %c0_15 = arith.constant 0 : index
    %11 = vector.load %arg6[%c32_14, %c0_15] : memref<48x128xbf16, #tpu.memory_space<vmem>>, vector<16x128xbf16>
    tpu.vector_store %arg6[%c32_14, %c0_15], %10 {strides = array<i32>} : memref<48x128xbf16, #tpu.memory_space<vmem>>, vector<16x128xbf16>,
    %c0_16 = arith.constant 0 : index
    %c0_17 = arith.constant 0 : index
    %12 = vector.load %arg6[%c0_16, %c0_17] : memref<48x128xbf16, #tpu.memory_space<vmem>>, vector<48x128xbf16>
    %c0_18 = arith.constant 0 : index
    %c0_19 = arith.constant 0 : index
    %13 = vector.load %arg3[%c0_18, %c0_19] : memref<8x48xbf16, #tpu.memory_space<vmem>>, vector<8x48xbf16>
    %cst = arith.constant dense<0.000000e+00> : vector<8x128xf32>
    %14 = tpu.matmul %13, %12, %cst {dimension_numbers = #tpu.dot_dimension_numbers<[1], [0], [0], [1], [0, 0, 1, 1], [], []>} : vector<8x48xbf16>, vector<48x128xbf16>, vector<8x128xf32> -> vector<8x128xf32>
    %c0_20 = arith.constant 0 : index
    %c0_21 = arith.constant 0 : index
    %c0_22 = arith.constant 0 : index
    %15 = vector.load %arg4[%c0_20, %c0_21, %c0_22] : memref<1x8x128xf32, #tpu.memory_space<vmem>>, vector<1x8x128xf32>
    %16 = vector.shape_cast %15 : vector<1x8x128xf32> to vector<8x128xf32>
    %17 = vector.shape_cast %14 : vector<8x128xf32> to vector<1x8x128xf32>
    tpu.vector_store %arg4[%c0_20, %c0_21, %c0_22], %17 {strides = array<i32>} : memref<1x8x128xf32, #tpu.memory_space<vmem>>, vector<1x8x128xf32>,
    %18 = tpu.iota {dimensions = array<i32: 1>} : vector<1x128xi32>
    %c128_i32 = arith.constant 128 : i32
    %19 = arith.muli %arg1, %c128_i32 : i32
    %20 = vector.broadcast %19 : i32 to vector<1x128xi32>
    %21 = arith.addi %18, %20 : vector<1x128xi32>
    %c256_i32 = arith.constant 256 : i32
    %22 = vector.broadcast %c256_i32 : i32 to vector<1x128xi32>
    %23 = arith.cmpi slt, %21, %22 : vector<1x128xi32>
    %cst_23 = arith.constant 0.000000e+00 : f32
    %24 = vector.shape_cast %23 : vector<1x128xi1> to vector<1x128xi1>
    %25 = vector.broadcast %24 : vector<1x128xi1> to vector<8x128xi1>
    %26 = vector.broadcast %cst_23 : f32 to vector<8x128xf32>
    %27 = arith.select %25, %14, %26 : vector<8x128xi1>, vector<8x128xf32>
    %c0_24 = arith.constant 0 : index
    %c0_25 = arith.constant 0 : index
    %c0_26 = arith.constant 0 : index
    %28 = vector.load %arg5[%c0_24, %c0_25, %c0_26] : memref<1x8x2xf32, #tpu.memory_space<vmem>>, vector<1x8x1xf32>
    %29 = vector.shape_cast %28 : vector<1x8x1xf32> to vector<8x1xf32>
    %cst_27 = arith.constant dense<0.000000e+00> : vector<8xf32>
    %30 = vector.multi_reduction <add>, %27, %cst_27 [1] : vector<8x128xf32> to vector<8xf32>
    %31 = vector.shape_cast %30 : vector<8xf32> to vector<8x1xf32>
    %32 = arith.addf %29, %31 : vector<8x1xf32>
    %c0_28 = arith.constant 0 : index
    %c0_29 = arith.constant 0 : index
    %c0_30 = arith.constant 0 : index
    %33 = vector.load %arg5[%c0_28, %c0_29, %c0_30] : memref<1x8x2xf32, #tpu.memory_space<vmem>>, vector<1x8x1xf32>
    %34 = vector.shape_cast %33 : vector<1x8x1xf32> to vector<8x1xf32>
    %35 = vector.shape_cast %32 : vector<8x1xf32> to vector<1x8x1xf32>
    tpu.vector_store %arg5[%c0_28, %c0_29, %c0_30], %35 {strides = array<i32>} : memref<1x8x2xf32, #tpu.memory_space<vmem>>, vector<1x8x1xf32>,
    %c0_31 = arith.constant 0 : index
    %c0_32 = arith.constant 0 : index
    %c1 = arith.constant 1 : index
    %36 = vector.load %arg5[%c0_31, %c0_32, %c1] : memref<1x8x2xf32, #tpu.memory_space<vmem>>, vector<1x8x1xf32>
    %37 = vector.shape_cast %36 : vector<1x8x1xf32> to vector<8x1xf32>
    %38 = arith.mulf %27, %27 : vector<8x128xf32>
    %cst_33 = arith.constant dense<0.000000e+00> : vector<8xf32>
    %39 = vector.multi_reduction <add>, %38, %cst_33 [1] : vector<8x128xf32> to vector<8xf32>
    %40 = vector.shape_cast %39 : vector<8xf32> to vector<8x1xf32>
    %41 = arith.addf %37, %40 : vector<8x1xf32>
    %c0_34 = arith.constant 0 : index
    %c0_35 = arith.constant 0 : index
    %c1_36 = arith.constant 1 : index
    %42 = vector.load %arg5[%c0_34, %c0_35, %c1_36] : memref<1x8x2xf32, #tpu.memory_space<vmem>>, vector<1x8x1xf32>
    %43 = vector.shape_cast %42 : vector<1x8x1xf32> to vector<8x1xf32>
    %44 = vector.shape_cast %41 : vector<8x1xf32> to vector<1x8x1xf32>
    tpu.vector_store %arg5[%c0_34, %c0_35, %c1_36], %44 {strides = array<i32>} : memref<1x8x2xf32, #tpu.memory_space<vmem>>, vector<1x8x1xf32>,
    return
  }
  func.func @transform_0(%arg0: i32, %arg1: i32) -> (i32, i32, i32, i32) {
    %c0_i32 = arith.constant 0 : i32
    %c0_i32_0 = arith.constant 0 : i32
    %c0_i32_1 = arith.constant 0 : i32
    return %arg0, %arg1, %c0_i32, %c0_i32_0 : i32, i32, i32, i32
  }
  func.func @transform_1(%arg0: i32, %arg1: i32) -> (i32, i32) {
    %c0_i32 = arith.constant 0 : i32
    %c0_i32_0 = arith.constant 0 : i32
    %c0_i32_1 = arith.constant 0 : i32
    return %c0_i32, %c0_i32_0 : i32, i32
  }
  func.func @transform_2(%arg0: i32, %arg1: i32) -> (i32, i32, i32) {
    %c0_i32 = arith.constant 0 : i32
    %c0_i32_0 = arith.constant 0 : i32
    return %arg0, %c0_i32, %arg1 : i32, i32, i32
  }
  func.func @transform_3(%arg0: i32, %arg1: i32) -> (i32, i32, i32) {
    %c0_i32 = arith.constant 0 : i32
    %c0_i32_0 = arith.constant 0 : i32
    %c0_i32_1 = arith.constant 0 : i32
    return %arg0, %c0_i32, %c0_i32_0 : i32, i32, i32
  }
}

module attributes {stable_mosaic.version = 11 : i64} {
  func.func @_bn_relu_kernel(%arg0: i32, %arg1: i32, %arg2: memref<1x8x128xf32, #tpu.memory_space<vmem>>, %arg3: memref<8x1xf32, #tpu.memory_space<vmem>>, %arg4: memref<8x1xf32, #tpu.memory_space<vmem>>, %arg5: memref<1x8x128xf32, #tpu.memory_space<vmem>>) attributes {dimension_semantics = [#tpu.dimension_semantics<parallel>, #tpu.dimension_semantics<parallel>], iteration_bounds = array<i64: 2, 2>, scalar_prefetch = 0 : i64, scratch_operands = 0 : i64, tpu.core_type = #tpu.core_type<tc>, window_params = [{transform_indices = @transform_0, window_bounds = array<i64: 1, 8, 128>}, {pipeline_mode = #tpu.pipeline_mode<synchronous>, transform_indices = @transform_1, window_bounds = array<i64: 8, 1>}, {pipeline_mode = #tpu.pipeline_mode<synchronous>, transform_indices = @transform_2, window_bounds = array<i64: 8, 1>}, {transform_indices = @transform_3, window_bounds = array<i64: 1, 8, 128>}]} {
    %c0 = arith.constant 0 : index
    %c0_0 = arith.constant 0 : index
    %c0_1 = arith.constant 0 : index
    %0 = vector.load %arg2[%c0, %c0_0, %c0_1] : memref<1x8x128xf32, #tpu.memory_space<vmem>>, vector<1x8x128xf32>
    %1 = vector.shape_cast %0 : vector<1x8x128xf32> to vector<8x128xf32>
    %c0_2 = arith.constant 0 : index
    %c0_3 = arith.constant 0 : index
    %2 = vector.load %arg3[%c0_2, %c0_3] : memref<8x1xf32, #tpu.memory_space<vmem>>, vector<8x1xf32>
    %3 = vector.broadcast %2 : vector<8x1xf32> to vector<8x128xf32>
    %4 = arith.mulf %1, %3 : vector<8x128xf32>
    %c0_4 = arith.constant 0 : index
    %c0_5 = arith.constant 0 : index
    %5 = vector.load %arg4[%c0_4, %c0_5] : memref<8x1xf32, #tpu.memory_space<vmem>>, vector<8x1xf32>
    %6 = vector.broadcast %5 : vector<8x1xf32> to vector<8x128xf32>
    %7 = arith.addf %4, %6 : vector<8x128xf32>
    %cst = arith.constant 0.000000e+00 : f32
    %8 = vector.broadcast %cst : f32 to vector<8x128xf32>
    %9 = arith.maximumf %7, %8 : vector<8x128xf32>
    %c0_6 = arith.constant 0 : index
    %c0_7 = arith.constant 0 : index
    %c0_8 = arith.constant 0 : index
    %10 = vector.load %arg5[%c0_6, %c0_7, %c0_8] : memref<1x8x128xf32, #tpu.memory_space<vmem>>, vector<1x8x128xf32>
    %11 = vector.shape_cast %10 : vector<1x8x128xf32> to vector<8x128xf32>
    %12 = vector.shape_cast %9 : vector<8x128xf32> to vector<1x8x128xf32>
    tpu.vector_store %arg5[%c0_6, %c0_7, %c0_8], %12 {strides = array<i32>} : memref<1x8x128xf32, #tpu.memory_space<vmem>>, vector<1x8x128xf32>,
    return
  }
  func.func @transform_0(%arg0: i32, %arg1: i32) -> (i32, i32, i32) {
    %c0_i32 = arith.constant 0 : i32
    %c0_i32_0 = arith.constant 0 : i32
    return %arg0, %c0_i32, %arg1 : i32, i32, i32
  }
  func.func @transform_1(%arg0: i32, %arg1: i32) -> (i32, i32) {
    %c0_i32 = arith.constant 0 : i32
    %c0_i32_0 = arith.constant 0 : i32
    %c0_i32_1 = arith.constant 0 : i32
    return %c0_i32, %c0_i32_0 : i32, i32
  }
  func.func @transform_2(%arg0: i32, %arg1: i32) -> (i32, i32) {
    %c0_i32 = arith.constant 0 : i32
    %c0_i32_0 = arith.constant 0 : i32
    %c0_i32_1 = arith.constant 0 : i32
    return %c0_i32, %c0_i32_0 : i32, i32
  }
  func.func @transform_3(%arg0: i32, %arg1: i32) -> (i32, i32, i32) {
    %c0_i32 = arith.constant 0 : i32
    %c0_i32_0 = arith.constant 0 : i32
    return %arg0, %c0_i32, %arg1 : i32, i32, i32
  }
}

</mosaic_0001>

<llo_original>
// kernel: unit2d_forward.3
$region0: #{unit2d_forward.3}
  #allocation0 [shape = 'u32[]', space=smem, size = 0x4, offset = 0x4, fixed_abs, tag = 'smem constant byte address 0x4 - core index']
  #allocation1 [shape = 'u32[144,128]{1,0:T(1,128)}', space=vmem, size = 0x12000, scoped, tag = 'internal scratch']
  %s0 = inlined_call_operand.vmem [shape: f32[2,8,256], index: 0, kind: input, shape index: {}, may-alias: {0,3}]
  %s1 = inlined_call_operand.vmem [shape: f32[8,1], index: 1, kind: input, shape index: {}]
  %s2 = inlined_call_operand.vmem [shape: f32[8,1], index: 2, kind: input, shape index: {}]
  %s3 = inlined_call_operand.vmem [shape: f32[2,8,256], index: 3, kind: output, shape index: {}, may-alias: {0,3}]
  %s4 = sld [smem:[#allocation0]]
  $region45: #{unit2d_forward.3} parent=0
    _
  %s6 = ssub.s32 1, %s4
  %s7 = scalar_select 0, %s6, %s4
  loop: start=0, step=1, limit=6
  $region2: #{unit2d_forward.3} parent=0 // loop_pre_header
    _
  $region3: #{unit2d_forward.3} parent=0 // loop_header
    %s9 = sphi 0, %s13
    %p10 = scmp.ge.s32.totalorder %s9, 6
    %s16 = sphi 0, %s28
    %s17 = sphi 0, %s24
    %s18 = sphi 0, %s16
    %s19 = sphi 0, %s17
    %s20 = sphi 0, %s18
    %s21 = sphi 0, %s19
    %s33 = sphi 0, %s35
    %s36 = sphi 0, %s33
    %s37 = sphi 0, %s36
    %s53 = sphi 0, %s37
    %s57 = sphi 0, %s57
    %s59 = sphi 0, %s57
    %s60 = sphi 0, %s59
    %s74 = sphi 0, %s60
    %s78 = sphi 0, %s78
    %s80 = sphi 0, %s78
    %s81 = sphi 0, %s80
    %s95 = sphi 0, %s81
    %s103 = sphi 0, %s105
    %s106 = sphi 0, %s103
    %s107 = sphi 0, %s106
    %s123 = sphi 0, %s107
  $region4: #{unit2d_forward.3} parent=0 // loop_header_branch
    %12 = sbr.rel (%p10) target = $region8
  $region5: #{unit2d_forward.3} parent=0 // loop_body
    %s14 = ssub.s32 %s9, 1
    %s15 = ssub.s32 %s9, 2
    %s22 = sadd.s32 1, %s17
    %p23 = scmp.ge.s32.totalorder %s22, 2
    %s24 = scalar_select %p23, 0, %s22
    %s25 = sadd.s32 1, %s16
    %s26 = scalar_select %p23, %s25, %s16
    %p27 = scmp.ge.s32.totalorder %s26, 2
    %s28 = scalar_select %p27, 0, %s26
    %s29 = ssub.s32 %s16, %s28
    %s30 = ssub.s32 %s17, %s24
    %s31 = sor.u32 %s29, %s30
    %p32 = scmp.eq.s32.totalorder %s31, 0
    %s34 = sadd.s32 %s33, 1
    %s35 = scalar_select %p32, %s33, %s34
    %p38 = pneg %p32
    %p39 = scmp.eq.s32.totalorder %s9, 3
    %p40 = por %p38, %p39
    %p41 = scmp.ne.s32.totalorder %s33, %s36
    %p42 = scmp.eq.s32.totalorder %s9, 0
    %p43 = por %p41, %p42
    %p44 = scmp.ne.s32.totalorder %s33, %s36
    %p45 = scmp.eq.s32.totalorder %s14, 3
    %p46 = por %p44, %p45
    %p47 = scmp.ne.s32.totalorder %s36, %s37
    %p48 = scmp.eq.s32.totalorder %s14, 0
    %p49 = por %p47, %p48
    %p50 = scmp.ne.s32.totalorder %s36, %s37
    %p51 = scmp.eq.s32.totalorder %s15, 3
    %p52 = por %p50, %p51
    %p54 = scmp.ne.s32.totalorder %s37, %s53
    %p55 = scmp.eq.s32.totalorder %s15, 0
    %p56 = por %p54, %p55
    %s58 = sadd.s32 %s57, 1
    %p61 = scmp.eq.s32.totalorder %s9, 3
    %p62 = scmp.ne.s32.totalorder %s57, %s59
    %p63 = scmp.eq.s32.totalorder %s9, 0
    %p64 = por %p62, %p63
    %p65 = scmp.ne.s32.totalorder %s57, %s59
    %p66 = scmp.eq.s32.totalorder %s14, 3
    %p67 = por %p65, %p66
    %p68 = scmp.ne.s32.totalorder %s59, %s60
    %p69 = scmp.eq.s32.totalorder %s14, 0
    %p70 = por %p68, %p69
    %p71 = scmp.ne.s32.totalorder %s59, %s60
    %p72 = scmp.eq.s32.totalorder %s15, 3
    %p73 = por %p71, %p72
    %p75 = scmp.ne.s32.totalorder %s60, %s74
    %p76 = scmp.eq.s32.totalorder %s15, 0
    %p77 = por %p75, %p76
    %s79 = sadd.s32 %s78, 1
    %p82 = scmp.eq.s32.totalorder %s9, 3
    %p83 = scmp.ne.s32.totalorder %s78, %s80
    %p84 = scmp.eq.s32.totalorder %s9, 0
    %p85 = por %p83, %p84
    %p86 = scmp.ne.s32.totalorder %s78, %s80
    %p87 = scmp.eq.s32.totalorder %s14, 3
    %p88 = por %p86, %p87
    %p89 = scmp.ne.s32.totalorder %s80, %s81
    %p90 = scmp.eq.s32.totalorder %s14, 0
    %p91 = por %p89, %p90
    %p92 = scmp.ne.s32.totalorder %s80, %s81
    %p93 = scmp.eq.s32.totalorder %s15, 3
    %p94 = por %p92, %p93
    %p96 = scmp.ne.s32.totalorder %s81, %s95
    %p97 = scmp.eq.s32.totalorder %s15, 0
    %p98 = por %p96, %p97
    %s99 = ssub.s32 %s16, %s28
    %s100 = ssub.s32 %s17, %s24
    %s101 = sor.u32 %s99, %s100
    %p102 = scmp.eq.s32.totalorder %s101, 0
    %s104 = sadd.s32 %s103, 1
    %s105 = scalar_select %p102, %s103, %s104
    %p108 = pneg %p102
    %p109 = scmp.eq.s32.totalorder %s9, 3
    %p110 = por %p108, %p109
    %p111 = scmp.ne.s32.totalorder %s103, %s106
    %p112 = scmp.eq.s32.totalorder %s9, 0
    %p113 = por %p111, %p112
    %p114 = scmp.ne.s32.totalorder %s103, %s106
    %p115 = scmp.eq.s32.totalorder %s14, 3
    %p116 = por %p114, %p115
    %p117 = scmp.ne.s32.totalorder %s106, %s107
    %p118 = scmp.eq.s32.totalorder %s14, 0
    %p119 = por %p117, %p118
    %p120 = scmp.ne.s32.totalorder %s106, %s107
    %p121 = scmp.eq.s32.totalorder %s15, 3
    %p122 = por %p120, %p121
    %p124 = scmp.ne.s32.totalorder %s107, %s123
    %p125 = scmp.eq.s32.totalorder %s15, 0
    %p126 = por %p124, %p125
    %p127 = scmp.le.s32.totalorder 1, %s9
    %p128 = scmp.lt.s32.totalorder %s9, 5
    %p129 = pnand %p127, %p128
    %p130 = pneg %p129
    // Predicated region
    $region9: #{unit2d_forward.3} parent=5 // pred_check
      _
    $region10: #{unit2d_forward.3} parent=5 // pred_check_branch
      %132 = sbr.rel (%p129) target = $region12
    $region11: #{unit2d_forward.3} parent=5 // pred_region
      %s133 = ssub.s32 %s9, 1
      // Predicated region
      $region13: #{unit2d_forward.3} parent=11 // pred_check
        %p134 = pneg %p70
      $region14: #{unit2d_forward.3} parent=11 // pred_check_branch
        %136 = sbr.rel (%p134) target = $region16
      $region15: #{unit2d_forward.3} parent=11 // pred_region
        _
      $region16: #{unit2d_forward.3} parent=11 // pred_fallthru
        _
      // Predicated region
      $region17: #{unit2d_forward.3} parent=11 // pred_check
        %p137 = pneg %p91
      $region18: #{unit2d_forward.3} parent=11 // pred_check_branch
        %139 = sbr.rel (%p137) target = $region20
      $region19: #{unit2d_forward.3} parent=11 // pred_region
        _
      $region20: #{unit2d_forward.3} parent=11 // pred_fallthru
        _
    $region12: #{unit2d_forward.3} parent=5 // pred_fallthru
      _
    %p140 = scmp.lt.s32.totalorder %s9, 4
    // Predicated region
    $region21: #{unit2d_forward.3} parent=5 // pred_check
      %p141 = pneg %p140
    $region22: #{unit2d_forward.3} parent=5 // pred_check_branch
      %143 = sbr.rel (%p141) target = $region24
    $region23: #{unit2d_forward.3} parent=5 // pred_region
      // Predicated region
      $region25: #{unit2d_forward.3} parent=23 // pred_check
        %p144 = pneg %p43
      $region26: #{unit2d_forward.3} parent=23 // pred_check_branch
        %146 = sbr.rel (%p144) target = $region28
      $region27: #{unit2d_forward.3} parent=23 // pred_region
        %p147 = scmp.lt.s32.totalorder %s16, 1
        %s148 = scalar_select %p147, %s16, 1
        %p149 = scmp.lt.s32.totalorder %s17, 1
        %s150 = scalar_select %p149, %s17, 1
        %s151 = smul.addr %s148, 2
        %s152 = sadd.s32 %s150, %s151
        %s153 = smul.addr %s152, 8
        %s154 = scalar_lea.vmem %s0, %s153
      $region28: #{unit2d_forward.3} parent=23 // pred_fallthru
        _
    $region24: #{unit2d_forward.3} parent=5 // pred_fallthru
      _
    %p155 = scmp.le.s32.totalorder 1, %s9
    %p156 = scmp.lt.s32.totalorder %s9, 5
    %p157 = pnand %p155, %p156
    %p158 = pneg %p157
    // Predicated region
    $region29: #{unit2d_forward.3} parent=5 // pred_check
      _
    $region30: #{unit2d_forward.3} parent=5 // pred_check_branch
      %160 = sbr.rel (%p157) target = $region32
    $region31: #{unit2d_forward.3} parent=5 // pred_region
      %s161 = ssub.s32 %s9, 1
      %p162 = scmp.lt.s32.totalorder %s18, 1
      %s163 = scalar_select %p162, %s18, 1
      %p164 = scmp.lt.s32.totalorder %s19, 1
      %s165 = scalar_select %p164, %s19, 1
      %s166 = smul.addr %s163, 2
      %s167 = sadd.s32 %s165, %s166
      %s168 = smul.addr %s167, 8
      %s169 = scalar_lea.vmem %s0, %s168
      %p170 = pneg %p49
      %p171 = pneg %p46
      %p172 = pneg %p70
      %p173 = pneg %p67
      %p174 = pneg %p91
      %p175 = pneg %p88
      %p176 = pneg %p119
      %p177 = pneg %p116
      %p178 = scmp.lt.s32.totalorder %s18, 1
      %s179 = scalar_select %p178, %s18, 1
      %p180 = scmp.lt.s32.totalorder %s19, 1
      %s181 = scalar_select %p180, %s19, 1
      %s182 = smul.addr %s179, 2
      %s183 = sadd.s32 %s181, %s182
      %s184 = smul.addr %s183, 8
      %s185 = scalar_lea.vmem %s3, %s184
      %p186 = scmp.lt.s32.totalorder %s18, 1
      %s187 = scalar_select %p186, %s18, 1
      %p188 = scmp.lt.s32.totalorder %s19, 1
      %s189 = scalar_select %p188, %s19, 1
      %s190 = smul.addr %s187, 2
      %s191 = sadd.s32 %s189, %s190
      %s192 = smul.addr %s191, 8
      %s193 = scalar_lea.vmem %s0, %s192
      %p194 = scmp.lt.s32.totalorder %s18, 1
      %s195 = scalar_select %p194, %s18, 1
      %p196 = scmp.lt.s32.totalorder %s19, 1
      %s197 = scalar_select %p196, %s19, 1
      %s198 = smul.addr %s195, 2
      %s199 = sadd.s32 %s197, %s198
      %s200 = smul.addr %s199, 8
      %s201 = scalar_lea.vmem %s3, %s200
      %v202 = vld [vmem:[%s193] sm:$0xff]
      %v203 = vld [vmem:[%s1] sm:$0xff]
      %205 = vset.pattern.permute.xlu0 0
      %206 = vperm.xlu0 %205, %v203
      %v207 = vpop.permute.xlu0 %206
      %v209 = vmul.f32 %v202, %v207
      %v210 = vld [vmem:[%s2] sm:$0xff]
      %212 = vset.pattern.permute.xlu0 0
      %213 = vperm.xlu0 %212, %v210
      %v214 = vpop.permute.xlu0 %213
      %v216 = vadd.f32 %v209, %v214
      %v217 = vmax.f32 %v216, 0.0
      %218 = vst [vmem:[%s201] sm:$0xff] %v217
      %p219 = scmp.lt.s32.totalorder %s18, 1
      %s220 = scalar_select %p219, %s18, 1
      %p221 = scmp.lt.s32.totalorder %s19, 1
      %s222 = scalar_select %p221, %s19, 1
      %s223 = smul.addr %s220, 2
      %s224 = sadd.s32 %s222, %s223
      %s225 = smul.addr %s224, 8
      %s226 = scalar_lea.vmem %s3, %s225
      // Predicated region
      $region33: #{unit2d_forward.3} parent=31 // pred_check
        %p227 = pneg %p116
      $region34: #{unit2d_forward.3} parent=31 // pred_check_branch
        %229 = sbr.rel (%p227) target = $region36
      $region35: #{unit2d_forward.3} parent=31 // pred_region
        _
      $region36: #{unit2d_forward.3} parent=31 // pred_fallthru
        _
    $region32: #{unit2d_forward.3} parent=5 // pred_fallthru
      _
    %p230 = scmp.le.s32.totalorder 2, %s9
    // Predicated region
    $region37: #{unit2d_forward.3} parent=5 // pred_check
      %p231 = pneg %p230
    $region38: #{unit2d_forward.3} parent=5 // pred_check_branch
      %233 = sbr.rel (%p231) target = $region40
    $region39: #{unit2d_forward.3} parent=5 // pred_region
      %s234 = ssub.s32 %s9, 2
      // Predicated region
      $region41: #{unit2d_forward.3} parent=39 // pred_check
        %p235 = pneg %p122
      $region42: #{unit2d_forward.3} parent=39 // pred_check_branch
        %237 = sbr.rel (%p235) target = $region44
      $region43: #{unit2d_forward.3} parent=39 // pred_region
        %p238 = scmp.lt.s32.totalorder %s20, 1
        %s239 = scalar_select %p238, %s20, 1
        %p240 = scmp.lt.s32.totalorder %s21, 1
        %s241 = scalar_select %p240, %s21, 1
        %s242 = smul.addr %s239, 2
        %s243 = sadd.s32 %s241, %s242
        %s244 = smul.addr %s243, 8
        %s245 = scalar_lea.vmem %s3, %s244
      $region44: #{unit2d_forward.3} parent=39 // pred_fallthru
        _
    $region40: #{unit2d_forward.3} parent=5 // pred_fallthru
      _
  $region6: #{unit2d_forward.3} parent=0 // loop_footer
    %s13 = sadd.s32 1, %s9
  $region7: #{unit2d_forward.3} parent=0 // loop_footer_branch
    %8 = sbr.rel target = $region3
  $region8: #{unit2d_forward.3} parent=0 // loop_exit
    _

// kernel: unit2d_forward.2
$region0: #{unit2d_forward.2}
  #allocation0 [shape = 'u32[]', space=smem, size = 0x4, offset = 0x4, fixed_abs, tag = 'smem constant byte address 0x4 - core index']
  #allocation1 [shape = 'u32[144,128]{1,0:T(1,128)}', space=vmem, size = 0x12000, scoped, tag = 'internal scratch']
  #allocation2 [shape = 'bf16[48,128]{1,0:T(16,128)(2,1)}', space=vmem, size = 0x3000, scoped, tag = 'scratch operand']
  %s0 = inlined_call_operand.vmem [shape: bf16[2,2,16,160], index: 0, kind: input, shape index: {}]
  %s1 = inlined_call_operand.vmem [shape: bf16[8,48], index: 1, kind: input, shape index: {}]
  %s2 = inlined_call_operand.vmem [shape: f32[2,8,256], index: 2, kind: output, shape index: {0}]
  %s3 = inlined_call_operand.vmem [shape: f32[2,8,2], index: 3, kind: output, shape index: {1}]
  %4 = xla_tuple %s2, %s3
  %s5 = sld [smem:[#allocation0]]
  $region53: #{unit2d_forward.2} parent=0
    _
  %s7 = ssub.s32 1, %s5
  %s8 = scalar_select 0, %s7, %s5
  loop: start=0, step=1, limit=6
  $region2: #{unit2d_forward.2} parent=0 // loop_pre_header
    _
  $region3: #{unit2d_forward.2} parent=0 // loop_header
    %s10 = sphi 0, %s14
    %p11 = scmp.ge.s32.totalorder %s10, 6
    %s17 = sphi 0, %s29
    %s18 = sphi 0, %s25
    %s19 = sphi 0, %s17
    %s20 = sphi 0, %s18
    %s21 = sphi 0, %s19
    %s22 = sphi 0, %s20
    %s34 = sphi 0, %s36
    %s37 = sphi 0, %s34
    %s38 = sphi 0, %s37
    %s54 = sphi 0, %s38
    %s58 = sphi 0, %s58
    %s60 = sphi 0, %s58
    %s61 = sphi 0, %s60
    %s75 = sphi 0, %s61
    %s83 = sphi 0, %s85
    %s86 = sphi 0, %s83
    %s87 = sphi 0, %s86
    %s103 = sphi 0, %s87
    %s109 = sphi 0, %s111
    %s112 = sphi 0, %s109
    %s113 = sphi 0, %s112
    %s129 = sphi 0, %s113
  $region4: #{unit2d_forward.2} parent=0 // loop_header_branch
    %13 = sbr.rel (%p11) target = $region8
  $region5: #{unit2d_forward.2} parent=0 // loop_body
    %s15 = ssub.s32 %s10, 1
    %s16 = ssub.s32 %s10, 2
    %s23 = sadd.s32 1, %s18
    %p24 = scmp.ge.s32.totalorder %s23, 2
    %s25 = scalar_select %p24, 0, %s23
    %s26 = sadd.s32 1, %s17
    %s27 = scalar_select %p24, %s26, %s17
    %p28 = scmp.ge.s32.totalorder %s27, 2
    %s29 = scalar_select %p28, 0, %s27
    %s30 = ssub.s32 %s17, %s29
    %s31 = ssub.s32 %s18, %s25
    %s32 = sor.u32 %s30, %s31
    %p33 = scmp.eq.s32.totalorder %s32, 0
    %s35 = sadd.s32 %s34, 1
    %s36 = scalar_select %p33, %s34, %s35
    %p39 = pneg %p33
    %p40 = scmp.eq.s32.totalorder %s10, 3
    %p41 = por %p39, %p40
    %p42 = scmp.ne.s32.totalorder %s34, %s37
    %p43 = scmp.eq.s32.totalorder %s10, 0
    %p44 = por %p42, %p43
    %p45 = scmp.ne.s32.totalorder %s34, %s37
    %p46 = scmp.eq.s32.totalorder %s15, 3
    %p47 = por %p45, %p46
    %p48 = scmp.ne.s32.totalorder %s37, %s38
    %p49 = scmp.eq.s32.totalorder %s15, 0
    %p50 = por %p48, %p49
    %p51 = scmp.ne.s32.totalorder %s37, %s38
    %p52 = scmp.eq.s32.totalorder %s16, 3
    %p53 = por %p51, %p52
    %p55 = scmp.ne.s32.totalorder %s38, %s54
    %p56 = scmp.eq.s32.totalorder %s16, 0
    %p57 = por %p55, %p56
    %s59 = sadd.s32 %s58, 1
    %p62 = scmp.eq.s32.totalorder %s10, 3
    %p63 = scmp.ne.s32.totalorder %s58, %s60
    %p64 = scmp.eq.s32.totalorder %s10, 0
    %p65 = por %p63, %p64
    %p66 = scmp.ne.s32.totalorder %s58, %s60
    %p67 = scmp.eq.s32.totalorder %s15, 3
    %p68 = por %p66, %p67
    %p69 = scmp.ne.s32.totalorder %s60, %s61
    %p70 = scmp.eq.s32.totalorder %s15, 0
    %p71 = por %p69, %p70
    %p72 = scmp.ne.s32.totalorder %s60, %s61
    %p73 = scmp.eq.s32.totalorder %s16, 3
    %p74 = por %p72, %p73
    %p76 = scmp.ne.s32.totalorder %s61, %s75
    %p77 = scmp.eq.s32.totalorder %s16, 0
    %p78 = por %p76, %p77
    %s79 = ssub.s32 %s17, %s29
    %s80 = ssub.s32 %s18, %s25
    %s81 = sor.u32 %s79, %s80
    %p82 = scmp.eq.s32.totalorder %s81, 0
    %s84 = sadd.s32 %s83, 1
    %s85 = scalar_select %p82, %s83, %s84
    %p88 = pneg %p82
    %p89 = scmp.eq.s32.totalorder %s10, 3
    %p90 = por %p88, %p89
    %p91 = scmp.ne.s32.totalorder %s83, %s86
    %p92 = scmp.eq.s32.totalorder %s10, 0
    %p93 = por %p91, %p92
    %p94 = scmp.ne.s32.totalorder %s83, %s86
    %p95 = scmp.eq.s32.totalorder %s15, 3
    %p96 = por %p94, %p95
    %p97 = scmp.ne.s32.totalorder %s86, %s87
    %p98 = scmp.eq.s32.totalorder %s15, 0
    %p99 = por %p97, %p98
    %p100 = scmp.ne.s32.totalorder %s86, %s87
    %p101 = scmp.eq.s32.totalorder %s16, 3
    %p102 = por %p100, %p101
    %p104 = scmp.ne.s32.totalorder %s87, %s103
    %p105 = scmp.eq.s32.totalorder %s16, 0
    %p106 = por %p104, %p105
    %s107 = ssub.s32 %s17, %s29
    %p108 = scmp.eq.s32.totalorder %s107, 0
    %s110 = sadd.s32 %s109, 1
    %s111 = scalar_select %p108, %s109, %s110
    %p114 = pneg %p108
    %p115 = scmp.eq.s32.totalorder %s10, 3
    %p116 = por %p114, %p115
    %p117 = scmp.ne.s32.totalorder %s109, %s112
    %p118 = scmp.eq.s32.totalorder %s10, 0
    %p119 = por %p117, %p118
    %p120 = scmp.ne.s32.totalorder %s109, %s112
    %p121 = scmp.eq.s32.totalorder %s15, 3
    %p122 = por %p120, %p121
    %p123 = scmp.ne.s32.totalorder %s112, %s113
    %p124 = scmp.eq.s32.totalorder %s15, 0
    %p125 = por %p123, %p124
    %p126 = scmp.ne.s32.totalorder %s112, %s113
    %p127 = scmp.eq.s32.totalorder %s16, 3
    %p128 = por %p126, %p127
    %p130 = scmp.ne.s32.totalorder %s113, %s129
    %p131 = scmp.eq.s32.totalorder %s16, 0
    %p132 = por %p130, %p131
    %p133 = scmp.le.s32.totalorder 1, %s10
    %p134 = scmp.lt.s32.totalorder %s10, 5
    %p135 = pnand %p133, %p134
    %p136 = pneg %p135
    // Predicated region
    $region9: #{unit2d_forward.2} parent=5 // pred_check
      _
    $region10: #{unit2d_forward.2} parent=5 // pred_check_branch
      %138 = sbr.rel (%p135) target = $region12
    $region11: #{unit2d_forward.2} parent=5 // pred_region
      %s139 = ssub.s32 %s10, 1
      // Predicated region
      $region13: #{unit2d_forward.2} parent=11 // pred_check
        %p140 = pneg %p71
      $region14: #{unit2d_forward.2} parent=11 // pred_check_branch
        %142 = sbr.rel (%p140) target = $region16
      $region15: #{unit2d_forward.2} parent=11 // pred_region
        _
      $region16: #{unit2d_forward.2} parent=11 // pred_fallthru
        _
    $region12: #{unit2d_forward.2} parent=5 // pred_fallthru
      _
    %p143 = scmp.lt.s32.totalorder %s10, 4
    // Predicated region
    $region17: #{unit2d_forward.2} parent=5 // pred_check
      %p144 = pneg %p143
    $region18: #{unit2d_forward.2} parent=5 // pred_check_branch
      %146 = sbr.rel (%p144) target = $region20
    $region19: #{unit2d_forward.2} parent=5 // pred_region
      // Predicated region
      $region21: #{unit2d_forward.2} parent=19 // pred_check
        %p147 = pneg %p44
      $region22: #{unit2d_forward.2} parent=19 // pred_check_branch
        %149 = sbr.rel (%p147) target = $region24
      $region23: #{unit2d_forward.2} parent=19 // pred_region
        %p150 = scmp.lt.s32.totalorder %s17, 1
        %s151 = scalar_select %p150, %s17, 1
        %p152 = scmp.lt.s32.totalorder %s18, 1
        %s153 = scalar_select %p152, %s18, 1
        %s154 = smul.addr %s153, 4
        %s155 = smul.addr %s151, 8
        %s156 = sadd.s32 %s154, %s155
        %s157 = smul.addr %s156, 4
        %s158 = scalar_lea.vmem %s0, %s157
      $region24: #{unit2d_forward.2} parent=19 // pred_fallthru
        _
    $region20: #{unit2d_forward.2} parent=5 // pred_fallthru
      _
    %p159 = scmp.le.s32.totalorder 1, %s10
    %p160 = scmp.lt.s32.totalorder %s10, 5
    %p161 = pnand %p159, %p160
    %p162 = pneg %p161
    // Predicated region
    $region25: #{unit2d_forward.2} parent=5 // pred_check
      _
    $region26: #{unit2d_forward.2} parent=5 // pred_check_branch
      %164 = sbr.rel (%p161) target = $region28
    $region27: #{unit2d_forward.2} parent=5 // pred_region
      %s165 = ssub.s32 %s10, 1
      %p166 = scmp.lt.s32.totalorder %s19, 1
      %s167 = scalar_select %p166, %s19, 1
      %p168 = scmp.lt.s32.totalorder %s20, 1
      %s169 = scalar_select %p168, %s20, 1
      %s170 = smul.addr %s169, 4
      %s171 = smul.addr %s167, 8
      %s172 = sadd.s32 %s170, %s171
      %s173 = smul.addr %s172, 4
      %s174 = scalar_lea.vmem %s0, %s173
      %p175 = pneg %p50
      %p176 = pneg %p47
      %p177 = pneg %p71
      %p178 = pneg %p68
      %p179 = pneg %p99
      %p180 = pneg %p96
      %p181 = scmp.lt.s32.totalorder %s19, 1
      %s182 = scalar_select %p181, %s19, 1
      %p183 = scmp.lt.s32.totalorder %s20, 1
      %s184 = scalar_select %p183, %s20, 1
      %s185 = smul.addr %s182, 2
      %s186 = sadd.s32 %s184, %s185
      %s187 = smul.addr %s186, 8
      %s188 = scalar_lea.vmem %s2, %s187
      %p189 = pneg %p125
      %p190 = pneg %p122
      %p191 = scmp.lt.s32.totalorder %s19, 1
      %s192 = scalar_select %p191, %s19, 1
      %s193 = smul.addr %s192, 8
      %s194 = scalar_lea.vmem %s3, %s193
      %p195 = scmp.lt.s32.totalorder %s19, 1
      %s196 = scalar_select %p195, %s19, 1
      %p197 = scmp.lt.s32.totalorder %s20, 1
      %s198 = scalar_select %p197, %s20, 1
      %s199 = smul.addr %s198, 4
      %s200 = smul.addr %s196, 8
      %s201 = sadd.s32 %s199, %s200
      %s202 = smul.addr %s201, 4
      %s203 = scalar_lea.vmem %s0, %s202
      %p204 = scmp.lt.s32.totalorder %s19, 1
      %s205 = scalar_select %p204, %s19, 1
      %p206 = scmp.lt.s32.totalorder %s20, 1
      %s207 = scalar_select %p206, %s20, 1
      %s208 = smul.addr %s205, 2
      %s209 = sadd.s32 %s207, %s208
      %s210 = smul.addr %s209, 8
      %s211 = scalar_lea.vmem %s2, %s210
      %p212 = scmp.lt.s32.totalorder %s19, 1
      %s213 = scalar_select %p212, %s19, 1
      %s214 = smul.addr %s213, 8
      %s215 = scalar_lea.vmem %s3, %s214
      %p217 = scmp.eq.s32.totalorder %s20, 0
      // Predicated region
      $region29: #{unit2d_forward.2} parent=27 // pred_check
        %p218 = pneg %p217
      $region30: #{unit2d_forward.2} parent=27 // pred_check_branch
        %220 = sbr.rel (%p218) target = $region32
      $region31: #{unit2d_forward.2} parent=27 // pred_region
        %vm221 = vcmask 15360
        %222 = vst.msk [vmem:[%s215] sm:$0xff] %vm221, 0.0
      $region32: #{unit2d_forward.2} parent=27 // pred_fallthru
        _
      %v223 = vld [vmem:[%s203] sm:$0xf]
      %v224 = vld [vmem:[%s203 + $0x8] sm:$0xf]
      %v227 = vunpack.c.l.b16 %v223
      %v228 = vunpack.c.l.b16 %v224
      %v229 = vpack.c.b16 %v228, %v227
      %231 = vst [vmem:[#allocation2] sm:$0xff] %v229
      %v232 = vld [vmem:[%s203] sm:$0xff]
      %v233 = vld [vmem:[%s203 + $0x8] sm:$0xff]
      %v236 = vunpack.c.l.b16 %v232
      %v237 = vunpack.c.h.b16 %v232
      %v238 = vunpack.c.l.b16 %v233
      %v239 = vunpack.c.h.b16 %v233
      %v240 = vpack.c.b16 %v238, %v236
      %v241 = vpack.c.b16 %v239, %v237
      %242 = vrot.lane.b32.xlu0 %v240, 112
      %v243 = vpop.permute.xlu0 %242
      %244 = vrot.lane.b32.xlu0 %v241, 112
      %v245 = vpop.permute.xlu0 %244
      %vm246 = vcmask 916480
      %v247 = vsel %vm246, %v243, %v245
      %249 = vst [vmem:[#allocation2 + $0x8] sm:$0xff] %v247
      %v250 = vld [vmem:[%s203] sm:$0xff]
      %v251 = vld [vmem:[%s203 + $0x8] sm:$0xff]
      %v254 = vunpack.c.l.b16 %v250
      %v255 = vunpack.c.h.b16 %v250
      %v256 = vunpack.c.l.b16 %v251
      %v257 = vunpack.c.h.b16 %v251
      %v258 = vpack.c.b16 %v256, %v254
      %v259 = vpack.c.b16 %v257, %v255
      %260 = vrot.lane.b32.xlu0 %v258, 96
      %v261 = vpop.permute.xlu0 %260
      %262 = vrot.lane.b32.xlu0 %v259, 96
      %v263 = vpop.permute.xlu0 %262
      %vm264 = vcmask 785408
      %v265 = vsel %vm264, %v261, %v263
      %267 = vst [vmem:[#allocation2 + $0x10] sm:$0xff] %v265
      %v268 = vld [vmem:[#allocation2] sm:$0xff]
      %v269 = vld [vmem:[#allocation2 + $0x8] sm:$0xff]
      %v270 = vld [vmem:[#allocation2 + $0x10] sm:$0xff]
      %v271 = vld [vmem:[%s1] sm:$0xf]
      %vm272 = vcmask 392192
      %v274 = vsel %vm272, %v271, 0
      %276 = vmatprep.subr.bf16.mxu0 0
      %277 = vmatpush1.bf16.msra.mxu0 %v268
      %278 = vmatprep.subr.bf16.mxu0 0
      %279 = vmatpush1.bf16.msra.mxu0 %v269
      %280 = vmatprep.subr.bf16.mxu0 0
      %281 = vmatpush1.bf16.msra.mxu0 %v270
      %282 = vmatprep.subr.bf16.mxu0 0
      %283 = vmatpush1.bf16.msra.mxu0 0
      %284 = vmatprep.subr.bf16.mxu0 0
      %285 = vmatpush1.bf16.msra.mxu0 0
      %286 = vmatprep.subr.bf16.mxu0 0
      %287 = vmatpush1.bf16.msra.mxu0 0
      %288 = vmatprep.subr.bf16.mxu0 0
      %289 = vmatpush1.bf16.msra.mxu0 0
      %290 = vmatprep.subr.bf16.mxu0 0
      %291 = vmatpush1.bf16.msra.mxu0 0
      %292 = vmatprep.subr.bf16.mxu0 0
      %293 = vmatpush1.bf16.msra.mxu0 0
      %294 = vmatprep.subr.bf16.mxu0 0
      %295 = vmatpush1.bf16.msra.mxu0 0
      %296 = vmatprep.subr.bf16.mxu0 0
      %297 = vmatpush1.bf16.msra.mxu0 0
      %298 = vmatprep.subr.bf16.mxu0 0
      %299 = vmatpush1.bf16.msra.mxu0 0
      %300 = vmatprep.subr.bf16.mxu0 0
      %301 = vmatpush1.bf16.msra.mxu0 0
      %302 = vmatprep.subr.bf16.mxu0 0
      %303 = vmatpush1.bf16.msra.mxu0 0
      %304 = vmatprep.subr.bf16.mxu0 0
      %305 = vmatpush1.bf16.msra.mxu0 0
      %306 = vmatprep.subr.bf16.mxu0 0
      %307 = vmatpush1.bf16.msra.mxu0 0
      %308 = vmatprep.mubr.bf16.mxu0 0
      %309 = vmatmul.mubr.bf16.gmra.mrb[0].mxu0 %v274
      %v310 = vpop.f32.mrb[0].mxu0
      %v311 = vadd.f32 0.0, %v310
      %v312 = vpop.f32.mrb[0].mxu0
      %v313 = vpop.f32.mrb[0].mxu0
      %v314 = vpop.f32.mrb[0].mxu0
      %315 = vdwg.mxu0
      %316 = vst [vmem:[%s211] sm:$0xff] %v311
      %v317 = vlaneseq
      %v318 = vand.u32 %v317, 127
      %s319 = smul.u32 %s20, 128
      %v320 = vstv %s319
      %v321 = vadd.s32 %v318, %v320
      %vm322 = vcmp.lt.s32.totalorder %v321, 256
      %v323 = vsel %vm322, 1, 0
      %vm324 = vcmp.eq.s32.totalorder %v323, 1
      %v325 = vsel %vm324, %v311, 0.0
      %v326 = vld [vmem:[%s215] sm:$0xff]
      %327 = vadd.xlane.f32.xlu0 %v325
      %v328 = vpop.xlane.xlu0 %327
      %v329 = vadd.f32 %v326, %v328
      %vm330 = vcmask 7168
      %331 = vst.msk [vmem:[%s215] sm:$0xff] %vm330, %v329
      %v332 = vld [vmem:[%s215] sm:$0xff]
      %v333 = vmul.f32 %v325, %v325
      %334 = vadd.xlane.f32.xlu0 %v333
      %v335 = vpop.xlane.xlu0 %334
      %v336 = vadd.f32 %v332, %v335
      %vm337 = vcmask 15368
      %338 = vst.msk [vmem:[%s215] sm:$0xff] %vm337, %v336
      %p339 = scmp.lt.s32.totalorder %s19, 1
      %s340 = scalar_select %p339, %s19, 1
      %p341 = scmp.lt.s32.totalorder %s20, 1
      %s342 = scalar_select %p341, %s20, 1
      %s343 = smul.addr %s340, 2
      %s344 = sadd.s32 %s342, %s343
      %s345 = smul.addr %s344, 8
      %s346 = scalar_lea.vmem %s2, %s345
      %p347 = scmp.lt.s32.totalorder %s19, 1
      %s348 = scalar_select %p347, %s19, 1
      %s349 = smul.addr %s348, 8
      %s350 = scalar_lea.vmem %s3, %s349
      // Predicated region
      $region33: #{unit2d_forward.2} parent=27 // pred_check
        %p351 = pneg %p96
      $region34: #{unit2d_forward.2} parent=27 // pred_check_branch
        %353 = sbr.rel (%p351) target = $region36
      $region35: #{unit2d_forward.2} parent=27 // pred_region
        _
      $region36: #{unit2d_forward.2} parent=27 // pred_fallthru
        _
      // Predicated region
      $region37: #{unit2d_forward.2} parent=27 // pred_check
        %p354 = pneg %p122
      $region38: #{unit2d_forward.2} parent=27 // pred_check_branch
        %356 = sbr.rel (%p354) target = $region40
      $region39: #{unit2d_forward.2} parent=27 // pred_region
        _
      $region40: #{unit2d_forward.2} parent=27 // pred_fallthru
        _
    $region28: #{unit2d_forward.2} parent=5 // pred_fallthru
      _
    %p357 = scmp.le.s32.totalorder 2, %s10
    // Predicated region
    $region41: #{unit2d_forward.2} parent=5 // pred_check
      %p358 = pneg %p357
    $region42: #{unit2d_forward.2} parent=5 // pred_check_branch
      %360 = sbr.rel (%p358) target = $region44
    $region43: #{unit2d_forward.2} parent=5 // pred_region
      %s361 = ssub.s32 %s10, 2
      // Predicated region
      $region45: #{unit2d_forward.2} parent=43 // pred_check
        %p362 = pneg %p102
      $region46: #{unit2d_forward.2} parent=43 // pred_check_branch
        %364 = sbr.rel (%p362) target = $region48
      $region47: #{unit2d_forward.2} parent=43 // pred_region
        %p365 = scmp.lt.s32.totalorder %s21, 1
        %s366 = scalar_select %p365, %s21, 1
        %p367 = scmp.lt.s32.totalorder %s22, 1
        %s368 = scalar_select %p367, %s22, 1
        %s369 = smul.addr %s366, 2
        %s370 = sadd.s32 %s368, %s369
        %s371 = smul.addr %s370, 8
        %s372 = scalar_lea.vmem %s2, %s371
      $region48: #{unit2d_forward.2} parent=43 // pred_fallthru
        _
      // Predicated region
      $region49: #{unit2d_forward.2} parent=43 // pred_check
        %p373 = pneg %p128
      $region50: #{unit2d_forward.2} parent=43 // pred_check_branch
        %375 = sbr.rel (%p373) target = $region52
      $region51: #{unit2d_forward.2} parent=43 // pred_region
        %p376 = scmp.lt.s32.totalorder %s21, 1
        %s377 = scalar_select %p376, %s21, 1
        %s378 = smul.addr %s377, 8
        %s379 = scalar_lea.vmem %s3, %s378
      $region52: #{unit2d_forward.2} parent=43 // pred_fallthru
        _
    $region44: #{unit2d_forward.2} parent=5 // pred_fallthru
      _
  $region6: #{unit2d_forward.2} parent=0 // loop_footer
    %s14 = sadd.s32 1, %s10
  $region7: #{unit2d_forward.2} parent=0 // loop_footer_branch
    %9 = sbr.rel target = $region3
  $region8: #{unit2d_forward.2} parent=0 // loop_exit
    _

</llo_original>
